<compile_context>
chip_gen: v7x
topology: tpu7x:2x2x1
jax: 0.10.0
libtpu: 0.0.40
codegen_flags: <defaults>
</compile_context>

<pallas_src>
import jax
import jax.numpy as jnp
import numpy as np
from jax.experimental import pallas as pl
from jax.experimental.pallas import tpu as pltpu


def _make_seq_loss_kernel(n, weights, rows_total, tile_rows, expand_c):
    """weights[i] already includes the 1/C of the channel-mean.

    expand_c > 1: the valids ref is (rows, N) and is expanded to (rows, N*C)
    in-kernel via a one-hot MXU matmul.  expand_c == 1: the valids ref already
    matches the flat lane layout of the predictions.
    """
    has_partial_tile = (rows_total % tile_rows) != 0

    def kernel(*refs):
        pred_refs = refs[:n]
        tgt_ref = refs[n]
        valid_ref = refs[n + 1]
        out_ref = refs[n + 2]

        tgt = tgt_ref[...].astype(jnp.float32)
        # per-element weighted accumulation across the n predictions
        acc = jnp.float32(weights[0]) * jnp.abs(
            pred_refs[0][...].astype(jnp.float32) - tgt)
        for i in range(1, n):
            acc = acc + jnp.float32(weights[i]) * jnp.abs(
                pred_refs[i][...].astype(jnp.float32) - tgt)

        valid = valid_ref[...].astype(jnp.float32)
        if expand_c > 1:
            # Expand valid (rows, N) -> (rows, N*C) with a 0/1 one-hot matmul.
            # The MXU is idle (kernel is HBM-bound), so this is effectively
            # free and avoids streaming a pre-expanded mask from HBM.
            N = valid.shape[-1]
            L = N * expand_c
            n_ids = jax.lax.broadcasted_iota(jnp.int32, (N, L), 0)
            l_ids = jax.lax.broadcasted_iota(jnp.int32, (N, L), 1)
            lo = n_ids * expand_c          # avoid integer div: lane//C == n
            e_mat = ((l_ids >= lo) & (l_ids < lo + expand_c)).astype(jnp.float32)
            mask = jnp.dot(valid, e_mat, preferred_element_type=jnp.float32)
        else:
            mask = valid

        masked = acc * mask

        if has_partial_tile:
            # last row-tile extends past the array: zero any OOB rows so
            # unspecified padding (possibly inf/nan) never reaches the sum.
            m = pl.program_id(0)
            row = (jax.lax.broadcasted_iota(jnp.int32, masked.shape, 0)
                   + m * tile_rows)
            masked = jnp.where(row < rows_total, masked, 0.0)

        s = jnp.sum(masked)
        # broadcast the per-tile partial sum into this tile's own output block
        out_ref[...] = jnp.full(out_ref.shape, s, dtype=jnp.float32)

    return kernel


def sequence_loss_pallas(input, target, valids, gamma=0.8,
                         mean_mode='reduce_masked_mean', eps=1e-8):
    n = len(input)
    B, S, N, C = target.shape
    R = B * S        # row (sublane-tiled) axis
    L = N * C        # lane axis (flat, lane-dense)
    M = B * S * N

    # Free reshapes (row-major contiguous): no HBM copies of the big tensors.
    preds = [jnp.reshape(p, (R, L)) for p in input]
    tgt = jnp.reshape(target, (R, L))

    # Prefer the in-kernel C-expansion of the valid mask (saves a full-size
    # (R, L) HBM write + read); fall back to a wrapper-expanded mask if the
    # one-hot matrix would take too much VMEM.
    e_bytes = N * L * 4
    expand_in_kernel = (C > 1) and (e_bytes <= (2 << 20))
    if expand_in_kernel:
        val = jnp.reshape(valids.astype(jnp.float32), (R, N))
        val_lanes = N
        expand_c = C
    else:
        val = jnp.reshape(
            jnp.broadcast_to(valids.astype(jnp.float32)[..., None],
                             (B, S, N, C)), (R, L))
        val_lanes = L
        expand_c = 1

    # Row-tile sizing: (n preds + target) are double-buffered f32-sized tiles,
    # plus ~4 tile-sized f32 intermediates inside the kernel body; keep the
    # total comfortably under the default 32 MiB scoped VMEM (fits v7x too).
    per_row_bytes = (2 * (n + 1) + 4) * L * 4
    budget = 24 * 1024 * 1024
    max_rows = max(8, ((budget // per_row_bytes) // 8) * 8)
    max_rows = min(max_rows, 2048)   # diminishing returns past ~1-2K rows
    tile_rows = R if R <= max_rows else max_rows
    num_tiles = pl.cdiv(R, tile_rows)
    # TODO(synk): the lane axis (N*C) is not tiled; for extremely large N*C a
    # second grid axis over lanes would be needed to bound the tile size.

    # gamma**(n - idx) for idx = 1..n, with the 1/C of mean(dim=3) folded in.
    weights = [gamma ** (n - idx) / C for idx in range(1, n + 1)]

    kernel = _make_seq_loss_kernel(n, weights, R, tile_rows, expand_c)

    big_spec = pl.BlockSpec((tile_rows, L), lambda m: (m, 0))
    val_spec = pl.BlockSpec((tile_rows, val_lanes), lambda m: (m, 0))

    partials = pl.pallas_call(
        kernel,
        out_shape=jax.ShapeDtypeStruct((num_tiles, 8, 128), jnp.float32),
        grid_spec=pltpu.PrefetchScalarGridSpec(
            num_scalar_prefetch=0,
            grid=(num_tiles,),
            in_specs=[big_spec for _ in range(n)]   # n predictions
                     + [big_spec,                   # target
                        val_spec],                  # valids (compact)
            out_specs=pl.BlockSpec((1, 8, 128), lambda m: (m, 0, 0)),
        ),
        compiler_params=pltpu.CompilerParams(
            dimension_semantics=("parallel",)),
    )(*preds, tgt, val)

    numer = jnp.sum(partials[:, 0, 0])
    if mean_mode == 'reduce_masked_mean':
        denom = eps + jnp.sum(valids.astype(jnp.float32))
    elif mean_mode == 'mean':
        denom = jnp.float32(M)
    else:
        raise ValueError(mean_mode)
    return numer / denom


class SequenceLoss:
    def __init__(self, gamma: float = 0.8, max_flow: int = 400):
        self._gamma = gamma
        self._max_flow = max_flow  # TODO(synk): max_flow is never used in the reference forward path.

    def __call__(self, input, target, valids):
        # The reference forward mistakenly passes max_flow into sequence_loss;
        # we use the intended default mean_mode='reduce_masked_mean'.
        return sequence_loss_pallas(input=input, target=target, valids=valids,
                                    gamma=self._gamma)


def sequence_loss_ref(input, target, valids, gamma=0.8,
                      mean_mode='reduce_masked_mean', eps=1e-8):
    """Pure-JAX reference mirroring the (de-bugged) PyTorch code."""
    n = len(input)
    flow_loss = 0.0
    for idx in range(1, n + 1):
        w = gamma ** (n - idx)
        loss = jnp.mean(jnp.abs(input[idx - 1] - target), axis=3)
        if mean_mode == 'mean':
            flow_loss += w * jnp.mean(valids * loss)
        else:
            flow_loss += w * (jnp.sum(loss * valids) / (eps + jnp.sum(valids)))
    return flow_loss


if __name__ == "__main__":
    key = jax.random.PRNGKey(0)
    B, S, N, C, n_preds = 2, 8, 64, 2, 6   # (batch, seq, points, flow-dims), 6 iterative preds
    keys = jax.random.split(key, n_preds + 2)
    preds = [jax.random.normal(keys[i], (B, S, N, C), dtype=jnp.float32)
             for i in range(n_preds)]
    target = jax.random.normal(keys[n_preds], (B, S, N, C), dtype=jnp.float32)
    valids = (jax.random.uniform(keys[n_preds + 1], (B, S, N)) > 0.3).astype(jnp.float32)

    loss_mod = SequenceLoss(gamma=0.8)
    out = loss_mod(preds, target, valids)
    jax.block_until_ready(out)

    ref = sequence_loss_ref(preds, target, valids, gamma=0.8)
    assert np.allclose(np.asarray(out), np.asarray(ref), rtol=1e-5, atol=1e-5), (out, ref)
    print("KERNEL_OK")
</pallas_src>

<mosaic_0001>
module attributes {stable_mosaic.version = 11 : i64} {
  func.func @kernel(%arg0: i32, %arg1: memref<16x128xf32, #tpu.memory_space<vmem>>, %arg2: memref<16x128xf32, #tpu.memory_space<vmem>>, %arg3: memref<16x128xf32, #tpu.memory_space<vmem>>, %arg4: memref<16x128xf32, #tpu.memory_space<vmem>>, %arg5: memref<16x128xf32, #tpu.memory_space<vmem>>, %arg6: memref<16x128xf32, #tpu.memory_space<vmem>>, %arg7: memref<16x128xf32, #tpu.memory_space<vmem>>, %arg8: memref<16x64xf32, #tpu.memory_space<vmem>>, %arg9: memref<1x8x128xf32, #tpu.memory_space<vmem>>) attributes {dimension_semantics = [#tpu.dimension_semantics<parallel>], iteration_bounds = array<i64: 1>, scalar_prefetch = 0 : i64, scratch_operands = 0 : i64, tpu.core_type = #tpu.core_type<tc>, window_params = [{transform_indices = @transform_0, window_bounds = array<i64: 16, 128>}, {transform_indices = @transform_1, window_bounds = array<i64: 16, 128>}, {transform_indices = @transform_2, window_bounds = array<i64: 16, 128>}, {transform_indices = @transform_3, window_bounds = array<i64: 16, 128>}, {transform_indices = @transform_4, window_bounds = array<i64: 16, 128>}, {transform_indices = @transform_5, window_bounds = array<i64: 16, 128>}, {transform_indices = @transform_6, window_bounds = array<i64: 16, 128>}, {transform_indices = @transform_7, window_bounds = array<i64: 16, 64>}, {transform_indices = @transform_8, window_bounds = array<i64: 1, 8, 128>}]} {
    %c0 = arith.constant 0 : index
    %c0_0 = arith.constant 0 : index
    %0 = vector.load %arg7[%c0, %c0_0] : memref<16x128xf32, #tpu.memory_space<vmem>>, vector<16x128xf32>
    %c0_1 = arith.constant 0 : index
    %c0_2 = arith.constant 0 : index
    %1 = vector.load %arg1[%c0_1, %c0_2] : memref<16x128xf32, #tpu.memory_space<vmem>>, vector<16x128xf32>
    %2 = arith.subf %1, %0 : vector<16x128xf32>
    %3 = math.absf %2 : vector<16x128xf32>
    %cst = arith.constant 1.638400e-01 : f32
    %4 = vector.broadcast %cst : f32 to vector<16x128xf32>
    %5 = arith.mulf %4, %3 : vector<16x128xf32>
    %c0_3 = arith.constant 0 : index
    %c0_4 = arith.constant 0 : index
    %6 = vector.load %arg2[%c0_3, %c0_4] : memref<16x128xf32, #tpu.memory_space<vmem>>, vector<16x128xf32>
    %7 = arith.subf %6, %0 : vector<16x128xf32>
    %8 = math.absf %7 : vector<16x128xf32>
    %cst_5 = arith.constant 2.048000e-01 : f32
    %9 = vector.broadcast %cst_5 : f32 to vector<16x128xf32>
    %10 = arith.mulf %9, %8 : vector<16x128xf32>
    %11 = arith.addf %5, %10 : vector<16x128xf32>
    %c0_6 = arith.constant 0 : index
    %c0_7 = arith.constant 0 : index
    %12 = vector.load %arg3[%c0_6, %c0_7] : memref<16x128xf32, #tpu.memory_space<vmem>>, vector<16x128xf32>
    %13 = arith.subf %12, %0 : vector<16x128xf32>
    %14 = math.absf %13 : vector<16x128xf32>
    %cst_8 = arith.constant 2.560000e-01 : f32
    %15 = vector.broadcast %cst_8 : f32 to vector<16x128xf32>
    %16 = arith.mulf %15, %14 : vector<16x128xf32>
    %17 = arith.addf %11, %16 : vector<16x128xf32>
    %c0_9 = arith.constant 0 : index
    %c0_10 = arith.constant 0 : index
    %18 = vector.load %arg4[%c0_9, %c0_10] : memref<16x128xf32, #tpu.memory_space<vmem>>, vector<16x128xf32>
    %19 = arith.subf %18, %0 : vector<16x128xf32>
    %20 = math.absf %19 : vector<16x128xf32>
    %cst_11 = arith.constant 3.200000e-01 : f32
    %21 = vector.broadcast %cst_11 : f32 to vector<16x128xf32>
    %22 = arith.mulf %21, %20 : vector<16x128xf32>
    %23 = arith.addf %17, %22 : vector<16x128xf32>
    %c0_12 = arith.constant 0 : index
    %c0_13 = arith.constant 0 : index
    %24 = vector.load %arg5[%c0_12, %c0_13] : memref<16x128xf32, #tpu.memory_space<vmem>>, vector<16x128xf32>
    %25 = arith.subf %24, %0 : vector<16x128xf32>
    %26 = math.absf %25 : vector<16x128xf32>
    %cst_14 = arith.constant 4.000000e-01 : f32
    %27 = vector.broadcast %cst_14 : f32 to vector<16x128xf32>
    %28 = arith.mulf %27, %26 : vector<16x128xf32>
    %29 = arith.addf %23, %28 : vector<16x128xf32>
    %c0_15 = arith.constant 0 : index
    %c0_16 = arith.constant 0 : index
    %30 = vector.load %arg6[%c0_15, %c0_16] : memref<16x128xf32, #tpu.memory_space<vmem>>, vector<16x128xf32>
    %31 = arith.subf %30, %0 : vector<16x128xf32>
    %32 = math.absf %31 : vector<16x128xf32>
    %cst_17 = arith.constant 5.000000e-01 : f32
    %33 = vector.broadcast %cst_17 : f32 to vector<16x128xf32>
    %34 = arith.mulf %33, %32 : vector<16x128xf32>
    %35 = arith.addf %29, %34 : vector<16x128xf32>
    %c0_18 = arith.constant 0 : index
    %c0_19 = arith.constant 0 : index
    %36 = vector.load %arg8[%c0_18, %c0_19] : memref<16x64xf32, #tpu.memory_space<vmem>>, vector<16x64xf32>
    %37 = tpu.iota {dimensions = array<i32: 0>} : vector<64x128xi32>
    %38 = tpu.iota {dimensions = array<i32: 1>} : vector<64x128xi32>
    %c2_i32 = arith.constant 2 : i32
    %39 = vector.broadcast %c2_i32 : i32 to vector<64x128xi32>
    %40 = arith.muli %37, %39 : vector<64x128xi32>
    %41 = arith.cmpi sge, %38, %40 : vector<64x128xi32>
    %c2_i32_20 = arith.constant 2 : i32
    %42 = vector.broadcast %c2_i32_20 : i32 to vector<64x128xi32>
    %43 = arith.addi %40, %42 : vector<64x128xi32>
    %44 = arith.cmpi slt, %38, %43 : vector<64x128xi32>
    %45 = arith.andi %41, %44 : vector<64x128xi1>
    %46 = arith.extui %45 : vector<64x128xi1> to vector<64x128xi32>
    %47 = arith.sitofp %46 : vector<64x128xi32> to vector<64x128xf32>
    %cst_21 = arith.constant dense<0.000000e+00> : vector<16x128xf32>
    %48 = tpu.matmul %36, %47, %cst_21 {dimension_numbers = #tpu.dot_dimension_numbers<[1], [0], [0], [1], [0, 0, 1, 1], [], []>} : vector<16x64xf32>, vector<64x128xf32>, vector<16x128xf32> -> vector<16x128xf32>
    %49 = arith.mulf %35, %48 : vector<16x128xf32>
    %50 = vector.shape_cast %49 : vector<16x128xf32> to vector<1x16x128xf32>
    %cst_22 = arith.constant dense<0.000000e+00> : vector<1xf32>
    %51 = vector.multi_reduction <add>, %50, %cst_22 [1, 2] : vector<1x16x128xf32> to vector<1xf32>
    %52 = vector.shape_cast %51 : vector<1xf32> to vector<1x1x1xf32>
    %53 = vector.extract %52[0, 0, 0] : f32 from vector<1x1x1xf32>
    %54 = vector.broadcast %53 : f32 to vector<1x8x128xf32>
    %c0_23 = arith.constant 0 : index
    %c0_24 = arith.constant 0 : index
    %c0_25 = arith.constant 0 : index
    %55 = vector.load %arg9[%c0_23, %c0_24, %c0_25] : memref<1x8x128xf32, #tpu.memory_space<vmem>>, vector<1x8x128xf32>
    tpu.vector_store %arg9[%c0_23, %c0_24, %c0_25], %54 {strides = array<i32>} : memref<1x8x128xf32, #tpu.memory_space<vmem>>, vector<1x8x128xf32>,
    return
  }
  func.func @transform_0(%arg0: i32) -> (i32, i32) {
    %c0_i32 = arith.constant 0 : i32
    %c0_i32_0 = arith.constant 0 : i32
    return %arg0, %c0_i32 : i32, i32
  }
  func.func @transform_1(%arg0: i32) -> (i32, i32) {
    %c0_i32 = arith.constant 0 : i32
    %c0_i32_0 = arith.constant 0 : i32
    return %arg0, %c0_i32 : i32, i32
  }
  func.func @transform_2(%arg0: i32) -> (i32, i32) {
    %c0_i32 = arith.constant 0 : i32
    %c0_i32_0 = arith.constant 0 : i32
    return %arg0, %c0_i32 : i32, i32
  }
  func.func @transform_3(%arg0: i32) -> (i32, i32) {
    %c0_i32 = arith.constant 0 : i32
    %c0_i32_0 = arith.constant 0 : i32
    return %arg0, %c0_i32 : i32, i32
  }
  func.func @transform_4(%arg0: i32) -> (i32, i32) {
    %c0_i32 = arith.constant 0 : i32
    %c0_i32_0 = arith.constant 0 : i32
    return %arg0, %c0_i32 : i32, i32
  }
  func.func @transform_5(%arg0: i32) -> (i32, i32) {
    %c0_i32 = arith.constant 0 : i32
    %c0_i32_0 = arith.constant 0 : i32
    return %arg0, %c0_i32 : i32, i32
  }
  func.func @transform_6(%arg0: i32) -> (i32, i32) {
    %c0_i32 = arith.constant 0 : i32
    %c0_i32_0 = arith.constant 0 : i32
    return %arg0, %c0_i32 : i32, i32
  }
  func.func @transform_7(%arg0: i32) -> (i32, i32) {
    %c0_i32 = arith.constant 0 : i32
    %c0_i32_0 = arith.constant 0 : i32
    return %arg0, %c0_i32 : i32, i32
  }
  func.func @transform_8(%arg0: i32) -> (i32, i32, i32) {
    %c0_i32 = arith.constant 0 : i32
    %c0_i32_0 = arith.constant 0 : i32
    %c0_i32_1 = arith.constant 0 : i32
    return %arg0, %c0_i32, %c0_i32_0 : i32, i32, i32
  }
}

</mosaic_0001>

<llo_original>
// kernel: tpu_custom_call.1
$region0: #{tpu_custom_call.1}
  #allocation0 [shape = 'u32[]', space=smem, size = 0x4, offset = 0x4, fixed_abs, tag = 'smem constant byte address 0x4 - core index']
  #allocation1 [shape = 'u32[144,128]{1,0:T(1,128)}', space=vmem, size = 0x12000, scoped, tag = 'internal scratch']
  %s0 = inlined_call_operand.hbm [shape: f32[16,128], index: 0, kind: input, shape index: {}]
  %s1 = inlined_call_operand.hbm [shape: f32[16,128], index: 1, kind: input, shape index: {}]
  %s2 = inlined_call_operand.hbm [shape: f32[16,128], index: 2, kind: input, shape index: {}]
  %s3 = inlined_call_operand.hbm [shape: f32[16,128], index: 3, kind: input, shape index: {}]
  %s4 = inlined_call_operand.hbm [shape: f32[16,128], index: 4, kind: input, shape index: {}]
  %s5 = inlined_call_operand.vmem [shape: f32[16,128], index: 5, kind: input, shape index: {}]
  %s6 = inlined_call_operand.hbm [shape: f32[16,128], index: 6, kind: input, shape index: {}]
  %s7 = inlined_call_operand.hbm [shape: f32[16,64], index: 7, kind: input, shape index: {}]
  %s8 = inlined_call_operand.hbm [shape: f32[1,8,128], index: 8, kind: output, shape index: {}]
  %s9 = sld [smem:[#allocation0]]
  $region70: #{tpu_custom_call.1} parent=0
    _
  %s11 = ssub.s32 1, %s9
  %s12 = scalar_select 0, %s11, %s9
  $region1: #{tpu_custom_call.1} parent=0
    #allocation2 [shape = 'u8[8192]{0}', space=vmem, size = 0x2000, scoped, tag = 'input window, operand 0, single buffered']
    #allocation3 [shape = 's32[1]{0}', space=sflag, size = 0x4, scoped, tag = 'scoped memory for tpu_custom_call.1']
    #allocation4 [shape = 's32[1]{0}', space=sflag, size = 0x4, scoped, tag = 'scoped memory for tpu_custom_call.1']
    #allocation5 [shape = 'u8[8192]{0}', space=vmem, size = 0x2000, scoped, tag = 'input window, operand 1, single buffered']
    #allocation6 [shape = 's32[1]{0}', space=sflag, size = 0x4, scoped, tag = 'scoped memory for tpu_custom_call.1']
    #allocation7 [shape = 'u8[8192]{0}', space=vmem, size = 0x2000, scoped, tag = 'input window, operand 2, single buffered']
    #allocation8 [shape = 'u8[8192]{0}', space=vmem, size = 0x2000, scoped, tag = 'input window, operand 3, single buffered']
    #allocation9 [shape = 's32[1]{0}', space=sflag, size = 0x4, scoped, tag = 'scoped memory for tpu_custom_call.1']
    #allocation10 [shape = 'u8[8192]{0}', space=vmem, size = 0x2000, scoped, tag = 'input window, operand 4, single buffered']
    #allocation11 [shape = 'u8[8192]{0}', space=vmem, size = 0x2000, scoped, tag = 'input window, operand 6, single buffered']
    #allocation12 [shape = 's32[1]{0}', space=sflag, size = 0x4, scoped, tag = 'scoped memory for tpu_custom_call.1']
    #allocation13 [shape = 'u8[8192]{0}', space=vmem, size = 0x2000, scoped, tag = 'input window, operand 7, single buffered']
    #allocation14 [shape = 'u8[4096]{0}', space=vmem, size = 0x1000, scoped, tag = 'output window, operand 0, single buffered']
    %13 = vsyncpa [#allocation3], 0
    %14 = vsyncpa [#allocation6], 0
    %15 = vsyncpa [#allocation9], 0
    %16 = vsyncpa [#allocation12], 0
    %17 = vsyncpa [#allocation4], 0
    // Predicated region
    $region2: #{tpu_custom_call.1} parent=1 // pred_check
      _
    $region3: #{tpu_custom_call.1} parent=1 // pred_check_branch
      %19 = sbr.rel (0) target = $region5
    $region4: #{tpu_custom_call.1} parent=1 // pred_region
      %s21 = ssub.s32 256, 256
      %22 = vsyncadd [#allocation3], %s21
      %s23 = sshll.u32 [#allocation2], 4
      %s24 = int_to_ptr.vmem [resolvable:$true] %s23
      %29 = dma.hbm_to_vmem [thread:$0]  %s0, 256, %s24, [#allocation3], 128, 128, 8
    $region5: #{tpu_custom_call.1} parent=1 // pred_fallthru
      _
    // Predicated region
    $region6: #{tpu_custom_call.1} parent=1 // pred_check
      _
    $region7: #{tpu_custom_call.1} parent=1 // pred_check_branch
      %31 = sbr.rel (0) target = $region9
    $region8: #{tpu_custom_call.1} parent=1 // pred_region
      %s33 = ssub.s32 256, 256
      %34 = vsyncadd [#allocation6], %s33
      %s35 = sshll.u32 [#allocation5], 4
      %s36 = int_to_ptr.vmem [resolvable:$true] %s35
      %41 = dma.hbm_to_vmem [thread:$0]  %s1, 256, %s36, [#allocation6], 128, 128, 8
    $region9: #{tpu_custom_call.1} parent=1 // pred_fallthru
      _
    // Predicated region
    $region10: #{tpu_custom_call.1} parent=1 // pred_check
      _
    $region11: #{tpu_custom_call.1} parent=1 // pred_check_branch
      %43 = sbr.rel (0) target = $region13
    $region12: #{tpu_custom_call.1} parent=1 // pred_region
      %s45 = ssub.s32 256, 256
      %46 = vsyncadd [#allocation6], %s45
      %s47 = sshll.u32 [#allocation7], 4
      %s48 = int_to_ptr.vmem [resolvable:$true] %s47
      %53 = dma.hbm_to_vmem [thread:$0]  %s2, 256, %s48, [#allocation6], 128, 128, 8
    $region13: #{tpu_custom_call.1} parent=1 // pred_fallthru
      _
    // Predicated region
    $region14: #{tpu_custom_call.1} parent=1 // pred_check
      _
    $region15: #{tpu_custom_call.1} parent=1 // pred_check_branch
      %55 = sbr.rel (0) target = $region17
    $region16: #{tpu_custom_call.1} parent=1 // pred_region
      %s57 = ssub.s32 256, 256
      %58 = vsyncadd [#allocation9], %s57
      %s59 = sshll.u32 [#allocation8], 4
      %s60 = int_to_ptr.vmem [resolvable:$true] %s59
      %65 = dma.hbm_to_vmem [thread:$0]  %s3, 256, %s60, [#allocation9], 128, 128, 8
    $region17: #{tpu_custom_call.1} parent=1 // pred_fallthru
      _
    // Predicated region
    $region18: #{tpu_custom_call.1} parent=1 // pred_check
      _
    $region19: #{tpu_custom_call.1} parent=1 // pred_check_branch
      %67 = sbr.rel (0) target = $region21
    $region20: #{tpu_custom_call.1} parent=1 // pred_region
      %s69 = ssub.s32 256, 256
      %70 = vsyncadd [#allocation9], %s69
      %s71 = sshll.u32 [#allocation10], 4
      %s72 = int_to_ptr.vmem [resolvable:$true] %s71
      %77 = dma.hbm_to_vmem [thread:$0]  %s4, 256, %s72, [#allocation9], 128, 128, 8
    $region21: #{tpu_custom_call.1} parent=1 // pred_fallthru
      _
    // Predicated region
    $region22: #{tpu_custom_call.1} parent=1 // pred_check
      _
    $region23: #{tpu_custom_call.1} parent=1 // pred_check_branch
      %79 = sbr.rel (0) target = $region25
    $region24: #{tpu_custom_call.1} parent=1 // pred_region
      _
    $region25: #{tpu_custom_call.1} parent=1 // pred_fallthru
      _
    // Predicated region
    $region26: #{tpu_custom_call.1} parent=1 // pred_check
      _
    $region27: #{tpu_custom_call.1} parent=1 // pred_check_branch
      %81 = sbr.rel (0) target = $region29
    $region28: #{tpu_custom_call.1} parent=1 // pred_region
      %s83 = ssub.s32 256, 256
      %84 = vsyncadd [#allocation12], %s83
      %s85 = sshll.u32 [#allocation11], 4
      %s86 = int_to_ptr.vmem [resolvable:$true] %s85
      %91 = dma.hbm_to_vmem [thread:$0]  %s6, 256, %s86, [#allocation12], 128, 128, 8
    $region29: #{tpu_custom_call.1} parent=1 // pred_fallthru
      _
    // Predicated region
    $region30: #{tpu_custom_call.1} parent=1 // pred_check
      _
    $region31: #{tpu_custom_call.1} parent=1 // pred_check_branch
      %93 = sbr.rel (0) target = $region33
    $region32: #{tpu_custom_call.1} parent=1 // pred_region
      %s95 = ssub.s32 256, 256
      %96 = vsyncadd [#allocation12], %s95
      %s97 = sshll.u32 [#allocation13], 4
      %s98 = int_to_ptr.vmem [resolvable:$true] %s97
      %103 = dma.hbm_to_vmem [thread:$0]  %s7, 256, %s98, [#allocation12], 128, 128, 8
    $region33: #{tpu_custom_call.1} parent=1 // pred_fallthru
      _
    // Predicated region
    $region34: #{tpu_custom_call.1} parent=1 // pred_check
      _
    $region35: #{tpu_custom_call.1} parent=1 // pred_check_branch
      %105 = sbr.rel (0) target = $region37
    $region36: #{tpu_custom_call.1} parent=1 // pred_region
      %106 = dma.done [#allocation3], 256
    $region37: #{tpu_custom_call.1} parent=1 // pred_fallthru
      _
    // Predicated region
    $region38: #{tpu_custom_call.1} parent=1 // pred_check
      _
    $region39: #{tpu_custom_call.1} parent=1 // pred_check_branch
      %108 = sbr.rel (0) target = $region41
    $region40: #{tpu_custom_call.1} parent=1 // pred_region
      %109 = dma.done [#allocation6], 256
    $region41: #{tpu_custom_call.1} parent=1 // pred_fallthru
      _
    // Predicated region
    $region42: #{tpu_custom_call.1} parent=1 // pred_check
      _
    $region43: #{tpu_custom_call.1} parent=1 // pred_check_branch
      %111 = sbr.rel (0) target = $region45
    $region44: #{tpu_custom_call.1} parent=1 // pred_region
      %112 = dma.done [#allocation6], 256
    $region45: #{tpu_custom_call.1} parent=1 // pred_fallthru
      _
    // Predicated region
    $region46: #{tpu_custom_call.1} parent=1 // pred_check
      _
    $region47: #{tpu_custom_call.1} parent=1 // pred_check_branch
      %114 = sbr.rel (0) target = $region49
    $region48: #{tpu_custom_call.1} parent=1 // pred_region
      %115 = dma.done [#allocation9], 256
    $region49: #{tpu_custom_call.1} parent=1 // pred_fallthru
      _
    // Predicated region
    $region50: #{tpu_custom_call.1} parent=1 // pred_check
      _
    $region51: #{tpu_custom_call.1} parent=1 // pred_check_branch
      %117 = sbr.rel (0) target = $region53
    $region52: #{tpu_custom_call.1} parent=1 // pred_region
      %118 = dma.done [#allocation9], 256
    $region53: #{tpu_custom_call.1} parent=1 // pred_fallthru
      _
    // Predicated region
    $region54: #{tpu_custom_call.1} parent=1 // pred_check
      _
    $region55: #{tpu_custom_call.1} parent=1 // pred_check_branch
      %120 = sbr.rel (0) target = $region57
    $region56: #{tpu_custom_call.1} parent=1 // pred_region
      %121 = dma.done [#allocation12], 256
    $region57: #{tpu_custom_call.1} parent=1 // pred_fallthru
      _
    // Predicated region
    $region58: #{tpu_custom_call.1} parent=1 // pred_check
      _
    $region59: #{tpu_custom_call.1} parent=1 // pred_check_branch
      %123 = sbr.rel (0) target = $region61
    $region60: #{tpu_custom_call.1} parent=1 // pred_region
      %124 = dma.done [#allocation12], 256
    $region61: #{tpu_custom_call.1} parent=1 // pred_fallthru
      _
    %v125 = vld [vmem:[#allocation11] sm:$0xff]
    %v126 = vld [vmem:[#allocation11 + $0x8] sm:$0xff]
    %v127 = vld [vmem:[#allocation2] sm:$0xff]
    %v128 = vld [vmem:[#allocation2 + $0x8] sm:$0xff]
    %v129 = vsub.f32 %v127, %v125
    %v130 = vsub.f32 %v128, %v126
    %v131 = vand.u32 2147483647, %v129
    %v132 = vand.u32 2147483647, %v130
    %v133 = vmul.f32 %v131, 0.16384
    %v134 = vmul.f32 %v132, 0.16384
    %v135 = vld [vmem:[#allocation5] sm:$0xff]
    %v136 = vld [vmem:[#allocation5 + $0x8] sm:$0xff]
    %v137 = vsub.f32 %v135, %v125
    %v138 = vsub.f32 %v136, %v126
    %v139 = vand.u32 2147483647, %v137
    %v140 = vand.u32 2147483647, %v138
    %v141 = vmul.f32 %v139, 0.2048
    %v142 = vmul.f32 %v140, 0.2048
    %v143 = vadd.f32 %v133, %v141
    %v144 = vadd.f32 %v134, %v142
    %v145 = vld [vmem:[#allocation7] sm:$0xff]
    %v146 = vld [vmem:[#allocation7 + $0x8] sm:$0xff]
    %v147 = vsub.f32 %v145, %v125
    %v148 = vsub.f32 %v146, %v126
    %v149 = vand.u32 2147483647, %v147
    %v150 = vand.u32 2147483647, %v148
    %v151 = vmul.f32 %v149, 0.256
    %v152 = vmul.f32 %v150, 0.256
    %v153 = vadd.f32 %v143, %v151
    %v154 = vadd.f32 %v144, %v152
    %v155 = vld [vmem:[#allocation8] sm:$0xff]
    %v156 = vld [vmem:[#allocation8 + $0x8] sm:$0xff]
    %v157 = vsub.f32 %v155, %v125
    %v158 = vsub.f32 %v156, %v126
    %v159 = vand.u32 2147483647, %v157
    %v160 = vand.u32 2147483647, %v158
    %v161 = vmul.f32 %v159, 0.32
    %v162 = vmul.f32 %v160, 0.32
    %v163 = vadd.f32 %v153, %v161
    %v164 = vadd.f32 %v154, %v162
    %v165 = vld [vmem:[#allocation10] sm:$0xff]
    %v166 = vld [vmem:[#allocation10 + $0x8] sm:$0xff]
    %v167 = vsub.f32 %v165, %v125
    %v168 = vsub.f32 %v166, %v126
    %v169 = vand.u32 2147483647, %v167
    %v170 = vand.u32 2147483647, %v168
    %v171 = vmul.f32 %v169, 0.4
    %v172 = vmul.f32 %v170, 0.4
    %v173 = vadd.f32 %v163, %v171
    %v174 = vadd.f32 %v164, %v172
    %v175 = vld [vmem:[%s5] sm:$0xff]
    %v176 = vld [vmem:[%s5 + $0x8] sm:$0xff]
    %v177 = vsub.f32 %v175, %v125
    %v178 = vsub.f32 %v176, %v126
    %v179 = vand.u32 2147483647, %v177
    %v180 = vand.u32 2147483647, %v178
    %v181 = vmul.f32 %v179, 0.5
    %v182 = vmul.f32 %v180, 0.5
    %v183 = vadd.f32 %v173, %v181
    %v184 = vadd.f32 %v174, %v182
    %v185 = vld [vmem:[#allocation13] sm:$0xff]
    %v186 = vld [vmem:[#allocation13 + $0x8] sm:$0xff]
    %v187 = vlaneseq
    %v188 = vshrl.u32 %v187, 7
    %v189 = vadd.s32 %v188, 8
    %v190 = vadd.s32 %v188, 16
    %v191 = vadd.s32 %v188, 24
    %v192 = vadd.s32 %v188, 32
    %v193 = vadd.s32 %v188, 40
    %v194 = vadd.s32 %v188, 48
    %v195 = vadd.s32 %v188, 56
    %v196 = vlaneseq
    %v197 = vand.u32 %v196, 127
    %v198 = vmul.u32 %v188, 2
    %v199 = vmul.u32 %v189, 2
    %v200 = vmul.u32 %v190, 2
    %v201 = vmul.u32 %v191, 2
    %v202 = vmul.u32 %v192, 2
    %v203 = vmul.u32 %v193, 2
    %v204 = vmul.u32 %v194, 2
    %v205 = vmul.u32 %v195, 2
    %vm206 = vcmp.ge.s32.totalorder %v197, %v198
    %vm207 = vcmp.ge.s32.totalorder %v197, %v199
    %vm208 = vcmp.ge.s32.totalorder %v197, %v200
    %vm209 = vcmp.ge.s32.totalorder %v197, %v201
    %vm210 = vcmp.ge.s32.totalorder %v197, %v202
    %vm211 = vcmp.ge.s32.totalorder %v197, %v203
    %vm212 = vcmp.ge.s32.totalorder %v197, %v204
    %vm213 = vcmp.ge.s32.totalorder %v197, %v205
    %v214 = vadd.s32 %v198, 2
    %v215 = vadd.s32 %v199, 2
    %v216 = vadd.s32 %v200, 2
    %v217 = vadd.s32 %v201, 2
    %v218 = vadd.s32 %v202, 2
    %v219 = vadd.s32 %v203, 2
    %v220 = vadd.s32 %v204, 2
    %v221 = vadd.s32 %v205, 2
    %vm222 = vcmp.lt.s32.totalorder %v197, %v214
    %vm223 = vcmp.lt.s32.totalorder %v197, %v215
    %vm224 = vcmp.lt.s32.totalorder %v197, %v216
    %vm225 = vcmp.lt.s32.totalorder %v197, %v217
    %vm226 = vcmp.lt.s32.totalorder %v197, %v218
    %vm227 = vcmp.lt.s32.totalorder %v197, %v219
    %vm228 = vcmp.lt.s32.totalorder %v197, %v220
    %vm229 = vcmp.lt.s32.totalorder %v197, %v221
    %vm230 = vmand %vm206, %vm222
    %vm231 = vmand %vm207, %vm223
    %vm232 = vmand %vm208, %vm224
    %vm233 = vmand %vm209, %vm225
    %vm234 = vmand %vm210, %vm226
    %vm235 = vmand %vm211, %vm227
    %vm236 = vmand %vm212, %vm228
    %vm237 = vmand %vm213, %vm229
    %v238 = vsel %vm230, 1, 0
    %v239 = vsel %vm231, 1, 0
    %v240 = vsel %vm232, 1, 0
    %v241 = vsel %vm233, 1, 0
    %v242 = vsel %vm234, 1, 0
    %v243 = vsel %vm235, 1, 0
    %v244 = vsel %vm236, 1, 0
    %v245 = vsel %vm237, 1, 0
    %v246 = vcvt.s32.f32 %v238
    %v247 = vcvt.s32.f32 %v239
    %v248 = vcvt.s32.f32 %v240
    %v249 = vcvt.s32.f32 %v241
    %v250 = vcvt.s32.f32 %v242
    %v251 = vcvt.s32.f32 %v243
    %v252 = vcvt.s32.f32 %v244
    %v253 = vcvt.s32.f32 %v245
    %vm254 = vcmask 523264
    %v256 = vsel %vm254, %v185, 0
    %v259 = vsel %vm254, %v186, 0
    %261 = vmatprep.subr.mxu0 0.0
    %262 = vmatpush1.msra.mxu0 %v246
    %263 = vmatprep.subr.mxu0 0.0
    %264 = vmatpush1.msra.mxu0 %v247
    %265 = vmatprep.subr.mxu0 0.0
    %266 = vmatpush1.msra.mxu0 %v248
    %267 = vmatprep.subr.mxu0 0.0
    %268 = vmatpush1.msra.mxu0 %v249
    %269 = vmatprep.subr.mxu0 0.0
    %270 = vmatpush1.msra.mxu0 %v250
    %271 = vmatprep.subr.mxu0 0.0
    %272 = vmatpush1.msra.mxu0 %v251
    %273 = vmatprep.subr.mxu0 0.0
    %274 = vmatpush1.msra.mxu0 %v252
    %275 = vmatprep.subr.mxu0 0.0
    %276 = vmatpush1.msra.mxu0 %v253
    %277 = vmatprep.subr.mxu0 0.0
    %278 = vmatpush1.msra.mxu0 0.0
    %279 = vmatprep.subr.mxu0 0.0
    %280 = vmatpush1.msra.mxu0 0.0
    %281 = vmatprep.subr.mxu0 0.0
    %282 = vmatpush1.msra.mxu0 0.0
    %283 = vmatprep.subr.mxu0 0.0
    %284 = vmatpush1.msra.mxu0 0.0
    %285 = vmatprep.subr.mxu0 0.0
    %286 = vmatpush1.msra.mxu0 0.0
    %287 = vmatprep.subr.mxu0 0.0
    %288 = vmatpush1.msra.mxu0 0.0
    %289 = vmatprep.subr.mxu0 0.0
    %290 = vmatpush1.msra.mxu0 0.0
    %291 = vmatprep.subr.mxu0 0.0
    %292 = vmatpush1.msra.mxu0 0.0
    %293 = vmatprep.subr.mxu0 0.0
    %294 = vmatpush1.msra.mxu0 0.0
    %295 = vmatprep.subr.mxu0 0.0
    %296 = vmatpush1.msra.mxu0 0.0
    %297 = vmatprep.subr.mxu0 0.0
    %298 = vmatpush1.msra.mxu0 0.0
    %299 = vmatprep.subr.mxu0 0.0
    %300 = vmatpush1.msra.mxu0 0.0
    %301 = vmatprep.subr.mxu0 0.0
    %302 = vmatpush1.msra.mxu0 0.0
    %303 = vmatprep.subr.mxu0 0.0
    %304 = vmatpush1.msra.mxu0 0.0
    %305 = vmatprep.subr.mxu0 0.0
    %306 = vmatpush1.msra.mxu0 0.0
    %307 = vmatprep.subr.mxu0 0.0
    %308 = vmatpush1.msra.mxu0 0.0
    %309 = vmatprep.subr.mxu0 0.0
    %310 = vmatpush1.msra.mxu0 0.0
    %311 = vmatprep.subr.mxu0 0.0
    %312 = vmatpush1.msra.mxu0 0.0
    %313 = vmatprep.subr.mxu0 0.0
    %314 = vmatpush1.msra.mxu0 0.0
    %315 = vmatprep.subr.mxu0 0.0
    %316 = vmatpush1.msra.mxu0 0.0
    %317 = vmatprep.subr.mxu0 0.0
    %318 = vmatpush1.msra.mxu0 0.0
    %319 = vmatprep.subr.mxu0 0.0
    %320 = vmatpush1.msra.mxu0 0.0
    %321 = vmatprep.subr.mxu0 0.0
    %322 = vmatpush1.msra.mxu0 0.0
    %323 = vmatprep.subr.mxu0 0.0
    %324 = vmatpush1.msra.mxu0 0.0
    %325 = vmatprep.mubr.f32.mxu0 0.0
    %326 = vmatmul.mubr.f32.gmra.mrb[0].mxu0 %v256
    %v327 = vpop.f32.mrb[0].mxu0
    %v328 = vadd.f32 0.0, %v327
    %v329 = vpop.f32.mrb[0].mxu0
    %330 = vmatprep.mubr.f32.mxu0 0.0
    %331 = vmatmul.mubr.f32.gmra.mrb[0].mxu0 %v259
    %v332 = vpop.f32.mrb[0].mxu0
    %v333 = vadd.f32 0.0, %v332
    %v334 = vpop.f32.mrb[0].mxu0
    %335 = vdwg.mxu0
    %v336 = vmul.f32 %v183, %v328
    %v337 = vmul.f32 %v184, %v333
    %v338 = vadd.f32 %v336, %v337
    %339 = vadd.xlane.f32.xlu0 %v338
    %v340 = vpop.xlane.xlu0 %339
    %v341 = vrot.slane %v340, 4
    %v342 = vadd.f32 %v340, %v341
    %v343 = vrot.slane %v342, 2
    %v344 = vadd.f32 %v342, %v343
    %v345 = vrot.slane %v344, 1
    %v346 = vadd.f32 %v344, %v345
    %s347 = vtos %v346
    %v348 = vstv %s347
    %349 = vst [vmem:[#allocation14] sm:$0xff] %v348
    // Predicated region
    $region62: #{tpu_custom_call.1} parent=1 // pred_check
      _
    $region63: #{tpu_custom_call.1} parent=1 // pred_check_branch
      %351 = sbr.rel (0) target = $region65
    $region64: #{tpu_custom_call.1} parent=1 // pred_region
      %s353 = ssub.s32 128, 128
      %354 = vsyncadd [#allocation4], %s353
      %s356 = sshll.u32 [#allocation14], 4
      %s357 = int_to_ptr.vmem [resolvable:$true] %s356
      %359 = dma.vmem_to_hbm [thread:$0]  %s357, 128, %s8, [#allocation4]
    $region65: #{tpu_custom_call.1} parent=1 // pred_fallthru
      _
    // Predicated region
    $region66: #{tpu_custom_call.1} parent=1 // pred_check
      _
    $region67: #{tpu_custom_call.1} parent=1 // pred_check_branch
      %361 = sbr.rel (0) target = $region69
    $region68: #{tpu_custom_call.1} parent=1 // pred_region
      %362 = dma.done [#allocation4], 128
    $region69: #{tpu_custom_call.1} parent=1 // pred_fallthru
      _
    %363 = vsyncpa [#allocation3], 1
    %364 = vsyncpa [#allocation6], 1
    %365 = vsyncpa [#allocation9], 1
    %366 = vsyncpa [#allocation12], 1
    %367 = vsyncpa [#allocation4], 1

</llo_original>
